<compile_context>
chip_gen: v7x
topology: tpu7x:2x2x1
jax: 0.10.0
libtpu: 0.0.40
codegen_flags: <defaults>
</compile_context>

<pallas_src>
import functools
import math

import jax
import jax.numpy as jnp
from jax.experimental import pallas as pl
from jax.experimental.pallas import tpu as pltpu

BN_EPS = 1e-5
CONV_DTYPE = jnp.bfloat16      # MXU operand dtype for the conv tower


# ----------------------------------------------------------------------------
# pltpu.roll direction self-check (tiny one-time probe kernel).
# We need shifted[i] = x[i + off]; the probe pins down the hardware rotate's
# sign convention so the conv taps can never be mirrored.
# ----------------------------------------------------------------------------
def _roll_probe_kernel(x_ref, o_ref):
    o_ref[...] = pltpu.roll(x_ref[...], shift=1, axis=0)


def roll_matches_numpy():
    x = jnp.arange(8 * 128, dtype=jnp.float32).reshape(8, 128)
    y = pl.pallas_call(
        _roll_probe_kernel,
        out_shape=jax.ShapeDtypeStruct((8, 128), jnp.float32),
    )(x)
    return bool(jnp.array_equal(y, jnp.roll(x, 1, axis=0)))


# ----------------------------------------------------------------------------
# Fused Corner2 forward kernel (one grid step per `batch_per_step` batch elems)
# ----------------------------------------------------------------------------
def _make_corner2_kernel(width, roll_sign):
    def kernel(t_ref, s_ref, coords_ref, m1, m2, m3, m4,
               w1, b1, w2, b2, w3, b3, w4, b4, w5, b5, box_ref):
        bps, N, C = t_ref.shape
        HW = s_ref.shape[1]
        n_img = bps * N
        M = n_img * HW

        # --- correlation + box features, kept entirely on-chip --------------
        # Row order of x is (image, h, w) with image = (batch-in-step, n):
        #   x[(bi*N + n)*HW + k, c] = corr_bi[k, n] * s_bi[k, c]
        rows = []
        for bi in range(bps):
            s = s_ref[bi]                                    # (HW, C)
            t = t_ref[bi]                                    # (N, C)
            corr = jax.lax.dot_general(                      # (HW, N)
                s, t, (((1,), (1,)), ((), ())),
                preferred_element_type=jnp.float32)
            for n in range(N):
                rows.append(corr[:, n:n + 1] * s)
        x = jnp.concatenate(rows, axis=0)                    # (M, C) f32

        # --- 4x (3x3 conv + BN + ReLU): one im2col matmul per layer ----------
        # SAFETY: pltpu.roll rotates across image boundaries on the stacked M
        # axis.  Every wrapped row corresponds to an out-of-image tap for that
        # position, and the host-built mask (same (image, h, w) row order,
        # |off| < HW) zeroes exactly those rows, so the wrap never leaks data.
        # Keep the mask tiling and this flattening order in sync.
        def conv3x3_bn_relu(x_in, mask_ref, w_ref, b_ref):
            taps = []
            for dy in (-1, 0, 1):
                for dx in (-1, 0, 1):
                    off = dy * width + dx
                    if off == 0:
                        taps.append(x_in)                    # center tap
                    else:
                        taps.append(pltpu.roll(
                            x_in, shift=(roll_sign * off) % M, axis=0))
            # lane-dense mask multiply in f32 (v5e VPU has no bf16)
            xs = jnp.concatenate(taps, axis=1) * mask_ref[...]   # (M, 9*cin)
            acc = jnp.dot(xs.astype(CONV_DTYPE), w_ref[...],     # bf16 MXU,
                          preferred_element_type=jnp.float32)    # f32 accum
            return jnp.maximum(acc + b_ref[...], 0.0)            # folded BN

        # NOTE(scale-up): at realistic channel counts (cout >= 128) tile cout
        # in 128-lane chunks / accumulate into a VMEM scratch to bound vreg
        # live ranges instead of this fully unrolled form.
        for mask_ref, w_ref, b_ref in ((m1, w1, b1), (m2, w2, b2),
                                       (m3, w3, b3), (m4, w4, b4)):
            x = conv3x3_bn_relu(x, mask_ref, w_ref, b_ref)

        # final 1x1 conv -> 2 channels: col 0 = tl score, col 1 = br score.
        # Tiny K (= hidden/8); kept as a small f32 dot (low priority).
        score = jnp.dot(x, w5[...],
                        preferred_element_type=jnp.float32) + b5[...]   # (M, 2)

        # --- per-image soft-argmax; probability map never materialized -------
        cx = coords_ref[:, 0:1]                              # (HW, 1)
        cy = coords_ref[:, 1:2]
        out_rows = []
        for i in range(n_img):
            seg = score[i * HW:(i + 1) * HW, :]              # (HW, 2)
            mx = jnp.max(seg, axis=0, keepdims=True)
            e = jnp.exp(seg - mx)
            # approx reciprocal on the EUP slot; ~1e-3 rel error on the boxes.
            inv_z = pl.reciprocal(jnp.sum(e, axis=0, keepdims=True), approx=True)
            ex = jnp.sum(cx * e, axis=0, keepdims=True) * inv_z   # (1,2): [l, r]
            ey = jnp.sum(cy * e, axis=0, keepdims=True) * inv_z   # (1,2): [t, b]
            out_rows.append(jnp.concatenate(
                [ex[:, 0:1], ey[:, 0:1], ex[:, 1:2], ey[:, 1:2]], axis=1))
        box = jnp.concatenate(out_rows, axis=0)              # (n_img, 4)
        box_ref[...] = box.reshape(bps, N, 4)                # single store

    return kernel


# ----------------------------------------------------------------------------
# Host-side helpers (masks, coords, specs, cost estimate)
# ----------------------------------------------------------------------------
def _make_tap_masks(H, W, n_imgs):
    h = jnp.arange(H)
    w = jnp.arange(W)
    cols = []
    for dy in (-1, 0, 1):
        hv = (h + dy >= 0) & (h + dy < H)
        for dx in (-1, 0, 1):
            wv = (w + dx >= 0) & (w + dx < W)
            cols.append((hv[:, None] & wv[None, :]).reshape(H * W))
    m = jnp.stack(cols, axis=1).astype(jnp.float32)          # (HW, 9)
    return jnp.tile(m, (n_imgs, 1))                          # (n_imgs*HW, 9)


def _make_im2col_masks(H, W, n_imgs, cins):
    """Per-layer lane-dense zero-padding masks, shape (n_imgs*HW, 9*cin)."""
    base = _make_tap_masks(H, W, n_imgs)                     # (M, 9)
    return [jnp.repeat(base, cin, axis=1) for cin in cins]


def _make_coords(H, W):
    cy, cx = jnp.meshgrid(jnp.arange(H, dtype=jnp.float32) / H,
                          jnp.arange(W, dtype=jnp.float32) / W, indexing='ij')
    return jnp.stack([cx.reshape(-1), cy.reshape(-1)], axis=1)   # (HW, 2)


def _const_spec(arr, single_buffer):
    nd = arr.ndim
    idx = lambda b, nd=nd: (0,) * nd
    if single_buffer:
        # same block every grid step -> no need to double-buffer in VMEM
        return pl.BlockSpec(arr.shape, idx, pipeline_mode=pl.Buffered(1))
    return pl.BlockSpec(arr.shape, idx)


def _nbytes(a):
    return int(math.prod(a.shape)) * a.dtype.itemsize


# ----------------------------------------------------------------------------
# Public forward
# ----------------------------------------------------------------------------
def corner2_forward(target_feat, search_feat, packed_params, *, roll_sign,
                    batch_per_step=None, single_buffer_consts=True):
    """target_feat: (N, B, C), search_feat: (B, C, H, W) -> (N, B, 4) boxes."""
    N, B, C = target_feat.shape
    H, W = search_feat.shape[-2:]
    HW = H * W

    if batch_per_step is None:
        # M = batch_per_step * N * HW rows per matmul.  256 rows fill the
        # v6e / v7x MXU; keep >= 2 grid steps so ("parallel",) can still split
        # the batch across v7x's two TensorCores.  On v5e (128x128 MXU) the
        # extra rows buy nothing -- pass batch_per_step=1 there.
        batch_per_step = 2 if (B >= 4 and N * HW <= 128) else 1
    if B % batch_per_step != 0:
        batch_per_step = 1
    bps = batch_per_step
    steps = B // bps
    n_img = bps * N
    M = n_img * HW

    target_bnc = jnp.transpose(target_feat, (1, 0, 2))                       # (B,N,C)
    search_bkc = jnp.transpose(search_feat, (0, 2, 3, 1)).reshape(B, HW, C)  # (B,HW,C)
    coords = _make_coords(H, W)                                              # (HW,2)
    cins = [packed_params[2 * l].shape[0] // 9 for l in range(4)]
    masks = _make_im2col_masks(H, W, n_img, cins)            # 4 x (M, 9*cin_l)

    kernel = _make_corner2_kernel(W, roll_sign)
    const_args = [coords] + masks + list(packed_params)

    in_specs = ([pl.BlockSpec((bps, N, C), lambda b: (b, 0, 0)),
                 pl.BlockSpec((bps, HW, C), lambda b: (b, 0, 0))]
                + [_const_spec(a, single_buffer_consts) for a in const_args])

    # advisory cost estimate for XLA's scheduler around the custom call
    conv_ws = packed_params[0:8:2]
    mm_flops = (sum(2 * M * w.shape[0] * w.shape[1] for w in conv_ws)
                + 2 * M * packed_params[8].shape[0] * packed_params[8].shape[1]
                + 2 * bps * HW * C * N)
    ew_flops = M * C + sum(3 * M * w.shape[1] for w in conv_ws) + 10 * M
    out_nbytes = B * N * 4 * 4
    cost = pl.CostEstimate(
        flops=int(steps * (mm_flops + ew_flops)),
        transcendentals=int(steps * (2 * M + 2 * n_img)),
        bytes_accessed=int(_nbytes(target_bnc) + _nbytes(search_bkc)
                           + out_nbytes + sum(_nbytes(a) for a in const_args)),
    )

    boxes = pl.pallas_call(
        kernel,
        out_shape=jax.ShapeDtypeStruct((B, N, 4), jnp.float32),
        grid=(steps,),
        in_specs=in_specs,
        out_specs=pl.BlockSpec((bps, N, 4), lambda b: (b, 0, 0)),
        compiler_params=pltpu.CompilerParams(
            dimension_semantics=("parallel",),
            # explicit VMEM budget: safe on v5e/v6e (128 MiB) and on v7x's
            # 64 MiB physical; re-derive when scaling channel counts.
            vmem_limit_bytes=32 * 1024 * 1024),
        cost_estimate=cost,
    )(target_bnc, search_bkc, *const_args)

    return jnp.transpose(boxes, (1, 0, 2))                                   # (N,B,4)


# ----------------------------------------------------------------------------
# Parameter construction / packing (plain-JAX glue)
# ----------------------------------------------------------------------------
def fold_bn(w, b, gamma, beta, mean, var, eps=BN_EPS):
    scale = gamma / jnp.sqrt(var + eps)
    return w * scale[:, None, None, None], (b - mean) * scale + beta


def pack_conv3x3_im2col(w_oihw, bias, dtype=CONV_DTYPE):
    """(cout, cin, 3, 3) -> (9*cin, cout), tap-major / channel-minor rows
    matching the kernel's im2col column order."""
    cout, cin = w_oihw.shape[:2]
    w = jnp.transpose(w_oihw, (2, 3, 1, 0)).reshape(9 * cin, cout)
    return w.astype(dtype), bias.reshape(1, cout).astype(jnp.float32)


def init_params(key, chans):
    """Random Corner2 params: 4x (conv3x3 + BN) and a 2-channel conv5."""
    layers = []
    keys = jax.random.split(key, 5)
    for li in range(4):
        cin, cout = chans[li], chans[li + 1]
        k = jax.random.split(keys[li], 6)
        layers.append(dict(
            w=jax.random.normal(k[0], (cout, cin, 3, 3), jnp.float32) / math.sqrt(cin * 9),
            b=0.1 * jax.random.normal(k[1], (cout,), jnp.float32),
            gamma=1.0 + 0.1 * jax.random.normal(k[2], (cout,), jnp.float32),
            beta=0.1 * jax.random.normal(k[3], (cout,), jnp.float32),
            mean=0.05 * jax.random.normal(k[4], (cout,), jnp.float32),
            var=0.9 + 0.2 * jax.random.uniform(k[5], (cout,), jnp.float32),
        ))
    cin = chans[-1]
    k = jax.random.split(keys[4], 2)
    w5 = jax.random.normal(k[0], (2, cin, 1, 1), jnp.float32) / math.sqrt(cin)
    b5 = 0.1 * jax.random.normal(k[1], (2,), jnp.float32)
    return layers, (w5, b5)


def pack_params(layers, conv5):
    packed = []
    for L in layers:
        wf, bf = fold_bn(L['w'], L['b'], L['gamma'], L['beta'], L['mean'], L['var'])
        packed += list(pack_conv3x3_im2col(wf, bf))
    w5, b5 = conv5
    packed += [jnp.transpose(w5[:, :, 0, 0]).astype(jnp.float32),   # (cin, 2)
               b5.reshape(1, 2).astype(jnp.float32)]
    return packed


# ----------------------------------------------------------------------------
# Pure-JAX reference (mirrors the PyTorch forward, eval-mode BatchNorm)
# ----------------------------------------------------------------------------
def reference_forward(target_feat, search_feat, layers, conv5):
    N, B, C = target_feat.shape
    H, W = search_feat.shape[-2:]
    sf = jnp.transpose(search_feat, (2, 3, 0, 1)).reshape(H * W, B, C)
    mask = jnp.einsum('nbc,kbc->kbn', target_feat, sf,
                      precision=jax.lax.Precision.HIGHEST)
    box_feat = mask[..., None] * sf[:, :, None, :]                 # (HW,B,N,C)
    box_feat = box_feat.reshape(H, W, B, N, C).transpose(2, 3, 4, 0, 1)
    x = box_feat.reshape(B * N, C, H, W)

    for L in layers:
        x = jax.lax.conv_general_dilated(
            x, L['w'], (1, 1), 'SAME',
            dimension_numbers=('NCHW', 'OIHW', 'NCHW'),
            precision=jax.lax.Precision.HIGHEST)
        x = x + L['b'][None, :, None, None]
        x = (x - L['mean'][None, :, None, None]) / jnp.sqrt(
            L['var'][None, :, None, None] + BN_EPS)
        x = x * L['gamma'][None, :, None, None] + L['beta'][None, :, None, None]
        x = jnp.maximum(x, 0.0)
    w5, b5 = conv5
    score = jax.lax.conv_general_dilated(
        x, w5, (1, 1), 'SAME',
        dimension_numbers=('NCHW', 'OIHW', 'NCHW'),
        precision=jax.lax.Precision.HIGHEST) + b5[None, :, None, None]
    tl, br = score[:, 0], score[:, 1]

    cy, cx = jnp.meshgrid(jnp.arange(H, dtype=jnp.float32) / H,
                          jnp.arange(W, dtype=jnp.float32) / W, indexing='ij')

    def sam(sm):
        p = jax.nn.softmax(sm.reshape(sm.shape[0], -1), axis=1)
        return jnp.sum(cx.reshape(-1) * p, axis=1), jnp.sum(cy.reshape(-1) * p, axis=1)

    l, t = sam(tl)
    r, b = sam(br)
    box = jnp.stack([l, t, r, b], axis=1)                          # (B*N, 4)
    return box.reshape(B, N, 4).transpose(1, 0, 2)                 # (N, B, 4)


# ----------------------------------------------------------------------------
if __name__ == "__main__":
    B, N, C0, H, W, HD = 2, 2, 8, 8, 8, 32
    key = jax.random.PRNGKey(0)
    kt, ks, kp = jax.random.split(key, 3)
    target_feat = jax.random.normal(kt, (N, B, C0), jnp.float32)     # [N B C]
    search_feat = jax.random.normal(ks, (B, C0, H, W), jnp.float32)  # [B C H W]

    chans = [C0, HD, HD // 2, HD // 4, HD // 8]
    layers, conv5 = init_params(kp, chans)
    packed = pack_params(layers, conv5)

    # pin down pltpu.roll's rotation direction once (tiny probe kernel)
    roll_sign = -1 if roll_matches_numpy() else 1

    fwd = jax.jit(functools.partial(corner2_forward, roll_sign=roll_sign))
    try:
        pred_boxes = jax.block_until_ready(fwd(target_feat, search_feat, packed))
    except Exception:
        # Fallback: if this jax build rejects pl.Buffered(1) on a top-level
        # pallas_call BlockSpec, rerun with default double-buffered constants.
        fwd = jax.jit(functools.partial(corner2_forward, roll_sign=roll_sign,
                                        single_buffer_consts=False))
        pred_boxes = jax.block_until_ready(fwd(target_feat, search_feat, packed))

    ref_boxes = reference_forward(target_feat, search_feat, layers, conv5)
    assert pred_boxes.shape == (N, B, 4)
    # tolerance covers the bf16 MXU conv tower (f32 accumulation) and the
    # approx reciprocal in the soft-argmax, vs. the f32 HIGHEST reference.
    assert jnp.allclose(pred_boxes, ref_boxes, atol=5e-2, rtol=5e-2), (
        pred_boxes, ref_boxes)
    print("KERNEL_OK")
</pallas_src>

<mosaic_0001>
module attributes {stable_mosaic.version = 11 : i64} {
  func.func @_roll_probe_kernel(%arg0: memref<8x128xf32, #tpu.memory_space<vmem>>, %arg1: memref<8x128xf32, #tpu.memory_space<vmem>>) attributes {dimension_semantics = [], scalar_prefetch = 0 : i64, scratch_operands = 0 : i64, tpu.core_type = #tpu.core_type<tc>} {
    %c0 = arith.constant 0 : index
    %c0_0 = arith.constant 0 : index
    %0 = vector.load %arg0[%c0, %c0_0] : memref<8x128xf32, #tpu.memory_space<vmem>>, vector<8x128xf32>
    %c1_i32 = arith.constant 1 : i32
    %1 = tpu.dynamic_rotate %0 by %c1_i32 dim 0 : vector<8x128xf32>, i32 -> vector<8x128xf32>
    %c0_1 = arith.constant 0 : index
    %c0_2 = arith.constant 0 : index
    %2 = vector.load %arg1[%c0_1, %c0_2] : memref<8x128xf32, #tpu.memory_space<vmem>>, vector<8x128xf32>
    tpu.vector_store %arg1[%c0_1, %c0_2], %1 {strides = array<i32>} : memref<8x128xf32, #tpu.memory_space<vmem>>, vector<8x128xf32>,
    return
  }
}

</mosaic_0001>

<llo_original>
// kernel: tpu_custom_call.1
$region0: #{tpu_custom_call.1}
  #allocation0 [shape = 'u32[]', space=smem, size = 0x4, offset = 0x4, fixed_abs, tag = 'smem constant byte address 0x4 - core index']
  #allocation1 [shape = 'u32[144,128]{1,0:T(1,128)}', space=vmem, size = 0x12000, scoped, tag = 'internal scratch']
  %s0 = inlined_call_operand.hbm [shape: f32[8,128], index: 0, kind: input, shape index: {}]
  %s1 = inlined_call_operand.hbm [shape: f32[8,128], index: 1, kind: output, shape index: {}]
  %s2 = sld [smem:[#allocation0]]
  $region18: #{tpu_custom_call.1} parent=0
    _
  %s4 = ssub.s32 1, %s2
  %s5 = scalar_select 0, %s4, %s2
  $region1: #{tpu_custom_call.1} parent=0
    #allocation2 [shape = 'u8[4096]{0}', space=vmem, size = 0x1000, scoped, tag = 'input window, operand 0, single buffered']
    #allocation3 [shape = 's32[1]{0}', space=sflag, size = 0x4, scoped, tag = 'scoped memory for tpu_custom_call.1']
    #allocation4 [shape = 's32[1]{0}', space=sflag, size = 0x4, scoped, tag = 'scoped memory for tpu_custom_call.1']
    #allocation5 [shape = 'u8[4096]{0}', space=vmem, size = 0x1000, scoped, tag = 'output window, operand 0, single buffered']
    %6 = vsyncpa [#allocation3], 0
    %7 = vsyncpa [#allocation4], 0
    // Predicated region
    $region2: #{tpu_custom_call.1} parent=1 // pred_check
      _
    $region3: #{tpu_custom_call.1} parent=1 // pred_check_branch
      %9 = sbr.rel (0) target = $region5
    $region4: #{tpu_custom_call.1} parent=1 // pred_region
      %s11 = ssub.s32 128, 128
      %12 = vsyncadd [#allocation3], %s11
      %s14 = sshll.u32 [#allocation2], 4
      %s15 = int_to_ptr.vmem [resolvable:$true] %s14
      %17 = dma.hbm_to_vmem [thread:$0]  %s0, 128, %s15, [#allocation3]
    $region5: #{tpu_custom_call.1} parent=1 // pred_fallthru
      _
    // Predicated region
    $region6: #{tpu_custom_call.1} parent=1 // pred_check
      _
    $region7: #{tpu_custom_call.1} parent=1 // pred_check_branch
      %19 = sbr.rel (0) target = $region9
    $region8: #{tpu_custom_call.1} parent=1 // pred_region
      %20 = dma.done [#allocation3], 128
    $region9: #{tpu_custom_call.1} parent=1 // pred_fallthru
      _
    %v21 = vld [vmem:[#allocation2] sm:$0xff]
    %v22 = vrot.slane %v21, 7
    %23 = vst [vmem:[#allocation5] sm:$0xff] %v22
    // Predicated region
    $region10: #{tpu_custom_call.1} parent=1 // pred_check
      _
    $region11: #{tpu_custom_call.1} parent=1 // pred_check_branch
      %25 = sbr.rel (0) target = $region13
    $region12: #{tpu_custom_call.1} parent=1 // pred_region
      %s27 = ssub.s32 128, 128
      %28 = vsyncadd [#allocation4], %s27
      %s30 = sshll.u32 [#allocation5], 4
      %s31 = int_to_ptr.vmem [resolvable:$true] %s30
      %33 = dma.vmem_to_hbm [thread:$0]  %s31, 128, %s1, [#allocation4]
    $region13: #{tpu_custom_call.1} parent=1 // pred_fallthru
      _
    // Predicated region
    $region14: #{tpu_custom_call.1} parent=1 // pred_check
      _
    $region15: #{tpu_custom_call.1} parent=1 // pred_check_branch
      %35 = sbr.rel (0) target = $region17
    $region16: #{tpu_custom_call.1} parent=1 // pred_region
      %36 = dma.done [#allocation4], 128
    $region17: #{tpu_custom_call.1} parent=1 // pred_fallthru
      _
    %37 = vsyncpa [#allocation3], 1
    %38 = vsyncpa [#allocation4], 1

</llo_original>
